<compile_context>
chip_gen: v5e
topology: v5e:2x2
jax: 0.10.0
libtpu: 0.0.40
codegen_flags: <defaults>
</compile_context>

<pallas_src>
import functools

import jax
import jax.numpy as jnp
from jax.experimental import pallas as pl
from jax.experimental.pallas import tpu as pltpu


def _vmem_capacity_bytes():
    """Per-core VMEM capacity; conservative v7x fallback if the query is unavailable."""
    try:
        return int(pltpu.get_tpu_info().vmem_capacity_bytes)
    except Exception:
        return 64 << 20  # v7x has the smallest per-TC VMEM of the supported generations


def _structured_logits_kernel(x_ref, w_ref, o_ref, *, matmul_dtype):
    """One (tm, N) output slab.

    x_ref : (tm, N)  logits tile (matmul LHS and residual)
    w_ref : (N, N)   dense, pre-scaled A^T in `matmul_dtype` (resident in VMEM across the grid)
    o_ref : (tm, N)  output tile
    """
    x = x_ref[...]
    neighbors = jnp.dot(x.astype(matmul_dtype), w_ref[...],
                        preferred_element_type=jnp.float32)
    o_ref[...] = (neighbors + x.astype(jnp.float32)).astype(o_ref.dtype)


def structured_logits_forward(logits, adj_dense, *, renormalize=False, tm=1024,
                              matmul_dtype=jnp.bfloat16, alias_input_output=False):
    """logits: (B, T, N); adj_dense: (N, N) dense adjacency A (A[i, j]).

    Output dtype follows `logits.dtype` (pass bf16 logits for a half-bandwidth streaming path).
    `matmul_dtype=jnp.float32` reproduces the PyTorch module's f32 numerics exactly.
    """
    B, T, N = logits.shape
    M = B * T
    assert N % 128 == 0, f"N={N} must be a multiple of 128 (lane dim)"

    out_dtype = logits.dtype

    # Flatten and pad rows to a multiple of 8 (sublane) so any tm that is a multiple of 8 is a
    # legal block shape; the ragged tail block (if any) is handled by pl.cdiv + masked writes.
    x = logits.reshape(M, N)
    M_pad = ((M + 7) // 8) * 8
    if M_pad != M:
        x = jnp.pad(x, ((0, M_pad - M), (0, 0)))
    tm = max(8, (min(tm, M_pad) // 8) * 8)
    grid = (pl.cdiv(M_pad, tm),)

    # Dense W = A^T so neighbors = x @ W. Fold the renormalization into W's columns.
    w = adj_dense.T.astype(jnp.float32)
    if renormalize:
        row_sum = jnp.sum(adj_dense, axis=1)  # row_sum[i] = sum_j A[i, j]
        # NOTE: faithful to the PyTorch module -- an all-zero adjacency row produces a
        # 0 * inf = nan column here, exactly like `neighbors / row_sum` (0/0) would.
        w = w / row_sum[None, :]
    w = w.astype(matmul_dtype)

    # --- VMEM budgeting (generation-aware, tight limit instead of the whole chip) ---------
    x_bytes = 2 * tm * N * jnp.dtype(x.dtype).itemsize          # double-buffered input tile
    o_bytes = 2 * tm * N * jnp.dtype(out_dtype).itemsize        # double-buffered output tile
    w_bytes = N * N * jnp.dtype(matmul_dtype).itemsize
    # Single-buffer the constant W only when double-buffering it would be expensive (big N);
    # at small N the default is fine and this branch never constructs pl.Buffered.
    single_buffer_w = (2 * w_bytes) > (8 << 20)
    w_bufs = 1 if single_buffer_w else 2
    footprint = x_bytes + o_bytes + w_bufs * w_bytes

    vmem_cap = _vmem_capacity_bytes()
    if footprint > int(0.7 * vmem_cap):
        # TODO(synk): fall back to a K-tiled grid (stream block-columns of W) when the dense
        # adjacency cannot stay resident in this chip's VMEM.
        raise NotImplementedError(
            f"W ({N}x{N}, {w_bytes >> 20} MiB) + tiles do not fit resident in "
            f"{vmem_cap >> 20} MiB VMEM; K-tiled fallback not implemented")
    vmem_limit = int(min(max(footprint + (4 << 20), 16 << 20), int(0.9 * vmem_cap)))

    w_spec_kwargs = {}
    if single_buffer_w:
        w_spec_kwargs["pipeline_mode"] = pl.Buffered(1)
    w_spec = pl.BlockSpec((N, N), lambda i: (0, 0), **w_spec_kwargs)  # constant -> DMA'd once

    io_aliases = {}
    if alias_input_output:
        # Only valid when no padding was added and dtypes match; saves an HBM allocation,
        # not bandwidth. Caller must not reuse the input logits afterwards.
        assert M_pad == M and x.dtype == out_dtype
        io_aliases = {0: 0}

    out_flat = pl.pallas_call(
        functools.partial(_structured_logits_kernel, matmul_dtype=matmul_dtype),
        out_shape=jax.ShapeDtypeStruct((M_pad, N), out_dtype),
        grid_spec=pltpu.PrefetchScalarGridSpec(
            num_scalar_prefetch=0,
            grid=grid,
            in_specs=[
                pl.BlockSpec((tm, N), lambda i: (i, 0)),  # x (matmul LHS + residual)
                w_spec,                                    # W, resident in VMEM
            ],
            out_specs=pl.BlockSpec((tm, N), lambda i: (i, 0)),  # lane-dense full-width output
        ),
        compiler_params=pltpu.CompilerParams(
            # TODO(synk): verify the "parallel" row axis is sharded across both v7x
            # TensorCores; if not, add an explicit leading core axis (CORE_PARALLEL/core_map).
            dimension_semantics=("parallel",),
            vmem_limit_bytes=vmem_limit,
        ),
        input_output_aliases=io_aliases,
    )(x, w)

    if M_pad != M:
        out_flat = out_flat[:M]
    return out_flat.reshape(B, T, N)


def build_sparse_adjacency(N, key):
    """Deterministically build a sparse COO adjacency and return its dense form.

    Each node i has edges to (i+1)%N, (i+3)%N, (i+7)%N with deterministic positive values
    (so row sums are nonzero). Stands in for the coalesced sparse tensor the PyTorch module
    would receive.
    """
    offsets = jnp.array([1, 3, 7], dtype=jnp.int32)
    rows = jnp.repeat(jnp.arange(N, dtype=jnp.int32), len(offsets))
    cols = (jnp.tile(jnp.arange(N, dtype=jnp.int32)[:, None], (1, len(offsets)))
            + offsets[None, :]).reshape(-1) % N
    vals = jax.random.uniform(key, (rows.shape[0],), dtype=jnp.float32,
                              minval=0.1, maxval=1.0)
    # TODO(synk): torch_sparse.coalesce(op='max') has no Pallas equivalent; duplicates are
    # avoided by construction here, and densification is done in JAX glue.
    dense = jnp.zeros((N, N), dtype=jnp.float32).at[rows, cols].set(vals)
    return dense


if __name__ == "__main__":
    key = jax.random.PRNGKey(0)
    k_adj, k_logits = jax.random.split(key)

    B, T, N = 2, 8, 256  # M = B*T = 16 rows, N = 256 nodes/classes
    renormalize = True

    adj_dense = build_sparse_adjacency(N, k_adj)
    logits = jax.random.normal(k_logits, (B, T, N), dtype=jnp.float32)

    fwd = jax.jit(functools.partial(structured_logits_forward, renormalize=renormalize))
    out = jax.block_until_ready(fwd(logits, adj_dense))

    # ---- Pure-JAX references ----
    flat = logits.reshape(-1, N)
    row_sum = jnp.sum(adj_dense, axis=1)
    # (a) exact f32 spec semantics (the PyTorch module)
    neighbors_f32 = flat @ adj_dense.T
    if renormalize:
        neighbors_f32 = neighbors_f32 / row_sum[None, :]
    ref_f32 = (neighbors_f32 + flat).reshape(B, T, N)
    # (b) identical math with bf16 matmul operands + f32 accumulation (the kernel's default)
    w_folded = adj_dense.T / row_sum[None, :] if renormalize else adj_dense.T
    neighbors_bf16 = jnp.dot(flat.astype(jnp.bfloat16), w_folded.astype(jnp.bfloat16),
                             preferred_element_type=jnp.float32)
    ref_bf16 = (neighbors_bf16 + flat).reshape(B, T, N)

    assert out.shape == (B, T, N) and out.dtype == logits.dtype
    err_tight = float(jnp.max(jnp.abs(out - ref_bf16)))
    err_spec = float(jnp.max(jnp.abs(out - ref_f32)))
    assert jnp.allclose(out, ref_bf16, atol=1e-3, rtol=1e-3), f"tight max abs err {err_tight}"
    assert jnp.allclose(out, ref_f32, atol=5e-2, rtol=5e-2), f"spec max abs err {err_spec}"

    # Exercise the bf16 streaming I/O path (halves HBM traffic when numerics allow).
    out_bf16 = jax.block_until_ready(fwd(logits.astype(jnp.bfloat16), adj_dense))
    assert out_bf16.shape == (B, T, N) and out_bf16.dtype == jnp.bfloat16
    assert jnp.allclose(out_bf16.astype(jnp.float32), ref_f32, atol=1e-1, rtol=5e-2)

    print("KERNEL_OK")
</pallas_src>

<mosaic_0001>
module attributes {stable_mosaic.version = 11 : i64} {
  func.func @_structured_logits_kernel(%arg0: i32, %arg1: memref<16x256xf32, #tpu.memory_space<vmem>>, %arg2: memref<256x256xbf16, #tpu.memory_space<vmem>>, %arg3: memref<16x256xf32, #tpu.memory_space<vmem>>) attributes {dimension_semantics = [#tpu.dimension_semantics<parallel>], iteration_bounds = array<i64: 1>, scalar_prefetch = 0 : i64, scratch_operands = 0 : i64, tpu.core_type = #tpu.core_type<tc>, window_params = [{transform_indices = @transform_0, window_bounds = array<i64: 16, 256>}, {pipeline_mode = #tpu.pipeline_mode<synchronous>, transform_indices = @transform_1, window_bounds = array<i64: 256, 256>}, {transform_indices = @transform_2, window_bounds = array<i64: 16, 256>}]} {
    %c0 = arith.constant 0 : index
    %c0_0 = arith.constant 0 : index
    %0 = vector.load %arg1[%c0, %c0_0] : memref<16x256xf32, #tpu.memory_space<vmem>>, vector<16x256xf32>
    %1 = arith.truncf %0 : vector<16x256xf32> to vector<16x256xbf16>
    %c0_1 = arith.constant 0 : index
    %c0_2 = arith.constant 0 : index
    %2 = vector.load %arg2[%c0_1, %c0_2] : memref<256x256xbf16, #tpu.memory_space<vmem>>, vector<256x256xbf16>
    %cst = arith.constant dense<0.000000e+00> : vector<16x256xf32>
    %3 = tpu.matmul %1, %2, %cst {dimension_numbers = #tpu.dot_dimension_numbers<[1], [0], [0], [1], [0, 0, 1, 1], [], []>} : vector<16x256xbf16>, vector<256x256xbf16>, vector<16x256xf32> -> vector<16x256xf32>
    %4 = arith.addf %3, %0 : vector<16x256xf32>
    %c0_3 = arith.constant 0 : index
    %c0_4 = arith.constant 0 : index
    %5 = vector.load %arg3[%c0_3, %c0_4] : memref<16x256xf32, #tpu.memory_space<vmem>>, vector<16x256xf32>
    tpu.vector_store %arg3[%c0_3, %c0_4], %4 {strides = array<i32>} : memref<16x256xf32, #tpu.memory_space<vmem>>, vector<16x256xf32>,
    return
  }
  func.func @transform_0(%arg0: i32) -> (i32, i32) {
    %c0_i32 = arith.constant 0 : i32
    %c0_i32_0 = arith.constant 0 : i32
    return %arg0, %c0_i32 : i32, i32
  }
  func.func @transform_1(%arg0: i32) -> (i32, i32) {
    %c0_i32 = arith.constant 0 : i32
    %c0_i32_0 = arith.constant 0 : i32
    %c0_i32_1 = arith.constant 0 : i32
    return %c0_i32, %c0_i32_0 : i32, i32
  }
  func.func @transform_2(%arg0: i32) -> (i32, i32) {
    %c0_i32 = arith.constant 0 : i32
    %c0_i32_0 = arith.constant 0 : i32
    return %arg0, %c0_i32 : i32, i32
  }
}

</mosaic_0001>

<llo_original>
// kernel: structured_logits_forward.1
$region0: #{structured_logits_forward.1}
  #allocation0 [shape = 'u32[]', space=smem, size = 0x4, offset = 0x4, fixed_abs, tag = 'smem constant byte address 0x4 - core index']
  #allocation1 [shape = 'u32[72,128]{1,0:T(1,128)}', space=vmem, size = 0x9000, scoped, tag = 'internal scratch']
  %s0 = inlined_call_operand.vmem [shape: f32[16,256], index: 0, kind: input, shape index: {}]
  %s1 = inlined_call_operand.vmem [shape: bf16[256,256], index: 1, kind: input, shape index: {}]
  %s2 = inlined_call_operand.hbm [shape: f32[16,256], index: 2, kind: output, shape index: {}]
  %s3 = sld [smem:[#allocation0]]
  $region18: #{structured_logits_forward.1} parent=0
    _
  %s5 = ssub.s32 1, %s3
  %s6 = scalar_select 0, %s5, %s3
  $region1: #{structured_logits_forward.1} parent=0
    #allocation2 [shape = 'u8[16384]{0}', space=vmem, size = 0x4000, scoped, tag = 'output window, operand 0, single buffered']
    #allocation3 [shape = 's32[1]{0}', space=sflag, size = 0x4, scoped, tag = 'scoped memory for structured_logits_forward.1']
    %7 = vsyncpa [#allocation3], 0
    // Predicated region
    $region2: #{structured_logits_forward.1} parent=1 // pred_check
      _
    $region3: #{structured_logits_forward.1} parent=1 // pred_check_branch
      %9 = sbr.rel (0) target = $region5
    $region4: #{structured_logits_forward.1} parent=1 // pred_region
      _
    $region5: #{structured_logits_forward.1} parent=1 // pred_fallthru
      _
    // Predicated region
    $region6: #{structured_logits_forward.1} parent=1 // pred_check
      _
    $region7: #{structured_logits_forward.1} parent=1 // pred_check_branch
      %11 = sbr.rel (0) target = $region9
    $region8: #{structured_logits_forward.1} parent=1 // pred_region
      _
    $region9: #{structured_logits_forward.1} parent=1 // pred_fallthru
      _
    %v12 = vld [vmem:[%s0] sm:$0xff]
    %v13 = vld [vmem:[%s0 + $0x8] sm:$0xff]
    %v14 = vld [vmem:[%s0 + $0x10] sm:$0xff]
    %v15 = vld [vmem:[%s0 + $0x18] sm:$0xff]
    %v16 = vpack.c.bf16 %v14, %v12
    %v17 = vpack.c.bf16 %v15, %v13
    %v18 = vld [vmem:[%s1] sm:$0xff]
    %v19 = vld [vmem:[%s1 + $0x8] sm:$0xff]
    %v20 = vld [vmem:[%s1 + $0x10] sm:$0xff]
    %v21 = vld [vmem:[%s1 + $0x18] sm:$0xff]
    %v22 = vld [vmem:[%s1 + $0x20] sm:$0xff]
    %v23 = vld [vmem:[%s1 + $0x28] sm:$0xff]
    %v24 = vld [vmem:[%s1 + $0x30] sm:$0xff]
    %v25 = vld [vmem:[%s1 + $0x38] sm:$0xff]
    %v26 = vld [vmem:[%s1 + $0x40] sm:$0xff]
    %v27 = vld [vmem:[%s1 + $0x48] sm:$0xff]
    %v28 = vld [vmem:[%s1 + $0x50] sm:$0xff]
    %v29 = vld [vmem:[%s1 + $0x58] sm:$0xff]
    %v30 = vld [vmem:[%s1 + $0x60] sm:$0xff]
    %v31 = vld [vmem:[%s1 + $0x68] sm:$0xff]
    %v32 = vld [vmem:[%s1 + $0x70] sm:$0xff]
    %v33 = vld [vmem:[%s1 + $0x78] sm:$0xff]
    %v34 = vld [vmem:[%s1 + $0x80] sm:$0xff]
    %v35 = vld [vmem:[%s1 + $0x88] sm:$0xff]
    %v36 = vld [vmem:[%s1 + $0x90] sm:$0xff]
    %v37 = vld [vmem:[%s1 + $0x98] sm:$0xff]
    %v38 = vld [vmem:[%s1 + $0xa0] sm:$0xff]
    %v39 = vld [vmem:[%s1 + $0xa8] sm:$0xff]
    %v40 = vld [vmem:[%s1 + $0xb0] sm:$0xff]
    %v41 = vld [vmem:[%s1 + $0xb8] sm:$0xff]
    %v42 = vld [vmem:[%s1 + $0xc0] sm:$0xff]
    %v43 = vld [vmem:[%s1 + $0xc8] sm:$0xff]
    %v44 = vld [vmem:[%s1 + $0xd0] sm:$0xff]
    %v45 = vld [vmem:[%s1 + $0xd8] sm:$0xff]
    %v46 = vld [vmem:[%s1 + $0xe0] sm:$0xff]
    %v47 = vld [vmem:[%s1 + $0xe8] sm:$0xff]
    %v48 = vld [vmem:[%s1 + $0xf0] sm:$0xff]
    %v49 = vld [vmem:[%s1 + $0xf8] sm:$0xff]
    %v82 = vunpack.c.l.b16 %v18
    %v83 = vunpack.c.h.b16 %v18
    %v84 = vunpack.c.l.b16 %v19
    %v85 = vunpack.c.h.b16 %v19
    %v86 = vunpack.c.l.b16 %v20
    %v87 = vunpack.c.h.b16 %v20
    %v88 = vunpack.c.l.b16 %v21
    %v89 = vunpack.c.h.b16 %v21
    %v90 = vunpack.c.l.b16 %v22
    %v91 = vunpack.c.h.b16 %v22
    %v92 = vunpack.c.l.b16 %v23
    %v93 = vunpack.c.h.b16 %v23
    %v94 = vunpack.c.l.b16 %v24
    %v95 = vunpack.c.h.b16 %v24
    %v96 = vunpack.c.l.b16 %v25
    %v97 = vunpack.c.h.b16 %v25
    %v98 = vunpack.c.l.b16 %v26
    %v99 = vunpack.c.h.b16 %v26
    %v100 = vunpack.c.l.b16 %v27
    %v101 = vunpack.c.h.b16 %v27
    %v102 = vunpack.c.l.b16 %v28
    %v103 = vunpack.c.h.b16 %v28
    %v104 = vunpack.c.l.b16 %v29
    %v105 = vunpack.c.h.b16 %v29
    %v106 = vunpack.c.l.b16 %v30
    %v107 = vunpack.c.h.b16 %v30
    %v108 = vunpack.c.l.b16 %v31
    %v109 = vunpack.c.h.b16 %v31
    %v110 = vunpack.c.l.b16 %v32
    %v111 = vunpack.c.h.b16 %v32
    %v112 = vunpack.c.l.b16 %v33
    %v113 = vunpack.c.h.b16 %v33
    %v114 = vunpack.c.l.b16 %v34
    %v115 = vunpack.c.h.b16 %v34
    %v116 = vunpack.c.l.b16 %v35
    %v117 = vunpack.c.h.b16 %v35
    %v118 = vunpack.c.l.b16 %v36
    %v119 = vunpack.c.h.b16 %v36
    %v120 = vunpack.c.l.b16 %v37
    %v121 = vunpack.c.h.b16 %v37
    %v122 = vunpack.c.l.b16 %v38
    %v123 = vunpack.c.h.b16 %v38
    %v124 = vunpack.c.l.b16 %v39
    %v125 = vunpack.c.h.b16 %v39
    %v126 = vunpack.c.l.b16 %v40
    %v127 = vunpack.c.h.b16 %v40
    %v128 = vunpack.c.l.b16 %v41
    %v129 = vunpack.c.h.b16 %v41
    %v130 = vunpack.c.l.b16 %v42
    %v131 = vunpack.c.h.b16 %v42
    %v132 = vunpack.c.l.b16 %v43
    %v133 = vunpack.c.h.b16 %v43
    %v134 = vunpack.c.l.b16 %v44
    %v135 = vunpack.c.h.b16 %v44
    %v136 = vunpack.c.l.b16 %v45
    %v137 = vunpack.c.h.b16 %v45
    %v138 = vunpack.c.l.b16 %v46
    %v139 = vunpack.c.h.b16 %v46
    %v140 = vunpack.c.l.b16 %v47
    %v141 = vunpack.c.h.b16 %v47
    %v142 = vunpack.c.l.b16 %v48
    %v143 = vunpack.c.h.b16 %v48
    %v144 = vunpack.c.l.b16 %v49
    %v145 = vunpack.c.h.b16 %v49
    %v146 = vpack.c.b16 %v84, %v82
    %v147 = vpack.c.b16 %v85, %v83
    %v148 = vpack.c.b16 %v88, %v86
    %v149 = vpack.c.b16 %v89, %v87
    %v150 = vpack.c.b16 %v92, %v90
    %v151 = vpack.c.b16 %v93, %v91
    %v152 = vpack.c.b16 %v96, %v94
    %v153 = vpack.c.b16 %v97, %v95
    %v154 = vpack.c.b16 %v100, %v98
    %v155 = vpack.c.b16 %v101, %v99
    %v156 = vpack.c.b16 %v104, %v102
    %v157 = vpack.c.b16 %v105, %v103
    %v158 = vpack.c.b16 %v108, %v106
    %v159 = vpack.c.b16 %v109, %v107
    %v160 = vpack.c.b16 %v112, %v110
    %v161 = vpack.c.b16 %v113, %v111
    %v162 = vpack.c.b16 %v116, %v114
    %v163 = vpack.c.b16 %v117, %v115
    %v164 = vpack.c.b16 %v120, %v118
    %v165 = vpack.c.b16 %v121, %v119
    %v166 = vpack.c.b16 %v124, %v122
    %v167 = vpack.c.b16 %v125, %v123
    %v168 = vpack.c.b16 %v128, %v126
    %v169 = vpack.c.b16 %v129, %v127
    %v170 = vpack.c.b16 %v132, %v130
    %v171 = vpack.c.b16 %v133, %v131
    %v172 = vpack.c.b16 %v136, %v134
    %v173 = vpack.c.b16 %v137, %v135
    %v174 = vpack.c.b16 %v140, %v138
    %v175 = vpack.c.b16 %v141, %v139
    %v176 = vpack.c.b16 %v144, %v142
    %v177 = vpack.c.b16 %v145, %v143
    %210 = vmatpush.bf16.msra.mxu0 %v160
    %211 = vmatpush.bf16.msra.mxu0 %v158
    %212 = vmatpush.bf16.msra.mxu0 %v156
    %213 = vmatpush.bf16.msra.mxu0 %v154
    %214 = vmatpush.bf16.msra.mxu0 %v152
    %215 = vmatpush.bf16.msra.mxu0 %v150
    %216 = vmatpush.bf16.msra.mxu0 %v148
    %217 = vmatpush.bf16.msra.mxu0 %v146
    %218 = vmatmul.bf16.gmra.mxu0 %v16
    %v219 = vpop.f32.mrf.mxu0
    %v220 = vadd.f32 %v12, %v219
    %v221 = vpop.f32.mrf.mxu0
    %v222 = vadd.f32 %v14, %v221
    %223 = vdwg.mxu0
    %224 = vmatpush.bf16.msra.mxu0 %v176
    %225 = vmatpush.bf16.msra.mxu0 %v174
    %226 = vmatpush.bf16.msra.mxu0 %v172
    %227 = vmatpush.bf16.msra.mxu0 %v170
    %228 = vmatpush.bf16.msra.mxu0 %v168
    %229 = vmatpush.bf16.msra.mxu0 %v166
    %230 = vmatpush.bf16.msra.mxu0 %v164
    %231 = vmatpush.bf16.msra.mxu0 %v162
    %232 = vmatmul.bf16.gmra.mxu0 %v17
    %v233 = vpop.f32.mrf.mxu0
    %v234 = vadd.f32 %v220, %v233
    %v235 = vpop.f32.mrf.mxu0
    %v236 = vadd.f32 %v222, %v235
    %237 = vdwg.mxu0
    %238 = vmatpush.bf16.msra.mxu0 %v161
    %239 = vmatpush.bf16.msra.mxu0 %v159
    %240 = vmatpush.bf16.msra.mxu0 %v157
    %241 = vmatpush.bf16.msra.mxu0 %v155
    %242 = vmatpush.bf16.msra.mxu0 %v153
    %243 = vmatpush.bf16.msra.mxu0 %v151
    %244 = vmatpush.bf16.msra.mxu0 %v149
    %245 = vmatpush.bf16.msra.mxu0 %v147
    %246 = vmatmul.bf16.gmra.mxu0 %v16
    %v247 = vpop.f32.mrf.mxu0
    %v248 = vadd.f32 %v13, %v247
    %v249 = vpop.f32.mrf.mxu0
    %v250 = vadd.f32 %v15, %v249
    %251 = vdwg.mxu0
    %252 = vmatpush.bf16.msra.mxu0 %v177
    %253 = vmatpush.bf16.msra.mxu0 %v175
    %254 = vmatpush.bf16.msra.mxu0 %v173
    %255 = vmatpush.bf16.msra.mxu0 %v171
    %256 = vmatpush.bf16.msra.mxu0 %v169
    %257 = vmatpush.bf16.msra.mxu0 %v167
    %258 = vmatpush.bf16.msra.mxu0 %v165
    %259 = vmatpush.bf16.msra.mxu0 %v163
    %260 = vmatmul.bf16.gmra.mxu0 %v17
    %v261 = vpop.f32.mrf.mxu0
    %v262 = vadd.f32 %v248, %v261
    %v263 = vpop.f32.mrf.mxu0
    %v264 = vadd.f32 %v250, %v263
    %265 = vdwg.mxu0
    %266 = vst [vmem:[#allocation2] sm:$0xff] %v234
    %267 = vst [vmem:[#allocation2 + $0x8] sm:$0xff] %v262
    %268 = vst [vmem:[#allocation2 + $0x10] sm:$0xff] %v236
    %269 = vst [vmem:[#allocation2 + $0x18] sm:$0xff] %v264
    // Predicated region
    $region10: #{structured_logits_forward.1} parent=1 // pred_check
      _
    $region11: #{structured_logits_forward.1} parent=1 // pred_check_branch
      %271 = sbr.rel (0) target = $region13
    $region12: #{structured_logits_forward.1} parent=1 // pred_region
      %273 = vsyncadd [#allocation3], 0
      %s274 = sshll.u32 [#allocation2], 4
      %s275 = int_to_ptr.vmem [resolvable:$true] %s274
      %s276 = sshll.u32 %s2, 4
      %s277 = int_to_ptr.hbm [resolvable:$true] %s276
      %282 = dma.vmem_to_hbm [thread:$0]  %s275, 512, %s277, [#allocation3], 256, 256, 16
    $region13: #{structured_logits_forward.1} parent=1 // pred_fallthru
      _
    // Predicated region
    $region14: #{structured_logits_forward.1} parent=1 // pred_check
      _
    $region15: #{structured_logits_forward.1} parent=1 // pred_check_branch
      %284 = sbr.rel (0) target = $region17
    $region16: #{structured_logits_forward.1} parent=1 // pred_region
      %286 = dma.done [#allocation3], 512
    $region17: #{structured_logits_forward.1} parent=1 // pred_fallthru
      _
    %287 = vsyncpa [#allocation3], 1

</llo_original>
